<compile_context>
chip_gen: v5e
topology: v5e:2x2
jax: 0.10.0
libtpu: 0.0.40
codegen_flags: <defaults>
</compile_context>

<pallas_src>
import jax
import jax.numpy as jnp
from jax import lax
from jax.experimental import pallas as pl
from jax.experimental.pallas import tpu as pltpu


def _pow_static(x, gamma):
    """x ** gamma; uses plain VALU multiplies when gamma is a small non-neg integer."""
    g = float(gamma)
    if g.is_integer() and 0.0 <= g <= 32.0:
        gi = int(g)
        if gi == 0:
            return jnp.ones_like(x)
        result = None
        base = x
        while gi:
            if gi & 1:
                result = base if result is None else result * base
            gi >>= 1
            if gi:
                base = base * base
        return result
    return x ** g  # non-integer gamma: EUP log+exp fallback


def _make_focal_kernel(*, gamma, n, tile, class_axis, has_alpha):
    sample_axis = 1 - class_axis

    def kernel(*refs):
        if has_alpha:
            logits_ref, targets_ref, alpha_ref, out_ref = refs
        else:
            logits_ref, targets_ref, out_ref = refs

        x = logits_ref[...].astype(jnp.float32)   # (TM, C) or (C, TM)
        tgt = targets_ref[...]                    # (TM, 1) or (1, TM) int32

        # One-hot of the target class, built on the VPU from a class-id iota.
        cls_id = lax.broadcasted_iota(jnp.int32, x.shape, class_axis)
        onehot = cls_id == tgt

        # Numerically stable log-softmax cross entropy; per-sample results stay 2-D.
        m = jnp.max(x, axis=class_axis, keepdims=True)
        lse = m + jnp.log(jnp.sum(jnp.exp(x - m), axis=class_axis, keepdims=True))
        tgt_logit = jnp.sum(jnp.where(onehot, x, 0.0), axis=class_axis, keepdims=True)
        bce = lse - tgt_logit                     # (TM, 1) or (1, TM)

        if has_alpha:
            # alpha[targets] was gathered in the wrapper (per-sample weight).
            bce = bce * alpha_ref[...].astype(jnp.float32)

        pt = jnp.exp(-bce)
        focal = _pow_static(1.0 - pt, gamma) * bce

        # Mask padded samples of a partial last tile (garbage rows -> 0).
        valid = n - pl.program_id(0) * tile
        samp_id = lax.broadcasted_iota(jnp.int32, bce.shape, sample_axis)
        focal = jnp.where(samp_id < valid, focal, 0.0)

        out_ref[0, 0] = jnp.sum(focal)            # per-tile partial sum

    return kernel


def focal_loss(logits, targets, *, alpha=None, gamma=5.0, tile=None):
    """logits: (N, C) float; targets: (N,) int class indices. Returns scalar f32."""
    n, c = logits.shape
    targets = targets.astype(jnp.int32)

    has_alpha = alpha is not None
    if has_alpha:
        alpha_per_sample = jnp.asarray(alpha, jnp.float32)[targets]   # (N,)

    # Lane-density: if C < 128 a (TM, C) tile wastes (128 - C)/128 of every vreg
    # lane, so flip the layout: classes on sublanes, batch on the 128-lane axis.
    classes_on_sublanes = c < 128
    lane_quantum = 128 if classes_on_sublanes else 8   # sub-extent blocks must align

    # Tile sizing: keep the double-buffered logits tile around ~8 MiB so it is
    # comfortable on every generation (v7x has only 64 MiB physical VMEM).
    itemsize = jnp.dtype(logits.dtype).itemsize
    if tile is None:
        tile = (8 * 1024 * 1024) // max(1, 2 * c * itemsize)
        tile = min(2048, tile)
    tile = int(tile)
    if tile >= n:
        tile = n                                    # single full-extent block
    else:
        tile = (tile // lane_quantum) * lane_quantum
        if tile < lane_quantum:
            tile = min(lane_quantum, n)
    num_tiles = pl.cdiv(n, tile)

    if classes_on_sublanes:
        logits_in = logits.T                        # (C, N): batch on lanes
        targets_in = targets.reshape(1, n)
        logits_spec = pl.BlockSpec((c, tile), lambda i: (0, i))
        targets_spec = pl.BlockSpec((1, tile), lambda i: (0, i))
        class_axis = 0
        if has_alpha:
            alpha_in = alpha_per_sample.reshape(1, n)
            alpha_spec = pl.BlockSpec((1, tile), lambda i: (0, i))
    else:
        logits_in = logits                          # (N, C): classes on lanes
        targets_in = targets.reshape(n, 1)
        logits_spec = pl.BlockSpec((tile, c), lambda i: (i, 0))
        targets_spec = pl.BlockSpec((tile, 1), lambda i: (i, 0))
        class_axis = 1
        if has_alpha:
            alpha_in = alpha_per_sample.reshape(n, 1)
            alpha_spec = pl.BlockSpec((tile, 1), lambda i: (i, 0))

    in_specs = [logits_spec, targets_spec]
    args = [logits_in, targets_in]
    if has_alpha:
        in_specs.append(alpha_spec)
        args.append(alpha_in)

    kernel = _make_focal_kernel(gamma=float(gamma), n=n, tile=tile,
                                class_axis=class_axis, has_alpha=has_alpha)

    partials = pl.pallas_call(
        kernel,
        out_shape=jax.ShapeDtypeStruct((num_tiles, 1), jnp.float32),
        grid=(num_tiles,),
        in_specs=in_specs,
        out_specs=pl.BlockSpec((1, 1), lambda i: (i, 0),
                               memory_space=pltpu.MemorySpace.SMEM),
        compiler_params=pltpu.CompilerParams(
            dimension_semantics=("parallel",)),
    )(*args)

    # Final reduction + mean over the true N, once, in the wrapper.
    return jnp.sum(partials) / n


def _focal_loss_ref(logits, targets, *, alpha=None, gamma=5.0):
    """Pure-JAX reference for sanity checking."""
    logp = jax.nn.log_softmax(logits.astype(jnp.float32), axis=-1)
    bce = -jnp.take_along_axis(logp, targets[:, None].astype(jnp.int32), axis=-1)[:, 0]
    if alpha is not None:
        bce = bce * jnp.asarray(alpha, jnp.float32)[targets]
    pt = jnp.exp(-bce)
    return jnp.mean((1.0 - pt) ** gamma * bce)


if __name__ == "__main__":
    key = jax.random.PRNGKey(0)
    k1, k2, k3, k4, k5 = jax.random.split(key, 5)

    # Case 1: small lane-sparse class count (C < 128 -> batch-on-lanes layout).
    N1, C1 = 8, 32
    logits1 = jax.random.normal(k1, (N1, C1), dtype=jnp.float32)
    targets1 = jax.random.randint(k2, (N1,), 0, C1, dtype=jnp.int32)
    out1 = jax.block_until_ready(focal_loss(logits1, targets1, gamma=5.0))
    ref1 = _focal_loss_ref(logits1, targets1, gamma=5.0)
    assert jnp.allclose(out1, ref1, rtol=1e-5, atol=1e-6), (out1, ref1)

    # Case 2: same, with per-class alpha weights (gathered in the wrapper).
    alpha2 = 0.5 + jax.random.uniform(k3, (C1,), dtype=jnp.float32)
    out2 = jax.block_until_ready(focal_loss(logits1, targets1, alpha=alpha2, gamma=5.0))
    ref2 = _focal_loss_ref(logits1, targets1, alpha=alpha2, gamma=5.0)
    assert jnp.allclose(out2, ref2, rtol=1e-5, atol=1e-6), (out2, ref2)

    # Case 3: classes-on-lanes layout (C >= 128), gridded batch with a partial last tile.
    N3, C3 = 200, 160
    logits3 = jax.random.normal(k4, (N3, C3), dtype=jnp.float32)
    targets3 = jax.random.randint(k2, (N3,), 0, C3, dtype=jnp.int32)
    out3 = jax.block_until_ready(focal_loss(logits3, targets3, gamma=2.0, tile=64))
    ref3 = _focal_loss_ref(logits3, targets3, gamma=2.0)
    assert jnp.allclose(out3, ref3, rtol=1e-5, atol=1e-5), (out3, ref3)

    # Case 4: batch-on-lanes layout with a partial last tile and non-integer gamma.
    N4, C4 = 300, 32
    logits4 = jax.random.normal(k5, (N4, C4), dtype=jnp.float32)
    targets4 = jax.random.randint(k3, (N4,), 0, C4, dtype=jnp.int32)
    out4 = jax.block_until_ready(focal_loss(logits4, targets4, gamma=2.5, tile=128))
    ref4 = _focal_loss_ref(logits4, targets4, gamma=2.5)
    assert jnp.allclose(out4, ref4, rtol=1e-5, atol=1e-5), (out4, ref4)

    print("KERNEL_OK")
</pallas_src>

<mosaic_0001>
module attributes {stable_mosaic.version = 11 : i64} {
  func.func @kernel(%arg0: i32, %arg1: memref<32x8xf32, #tpu.memory_space<vmem>>, %arg2: memref<1x8xi32, #tpu.memory_space<vmem>>, %arg3: memref<1x1xf32, #tpu.memory_space<smem>>) attributes {dimension_semantics = [#tpu.dimension_semantics<parallel>], iteration_bounds = array<i64: 1>, scalar_prefetch = 0 : i64, scratch_operands = 0 : i64, tpu.core_type = #tpu.core_type<tc>, window_params = [{transform_indices = @transform_0, window_bounds = array<i64: 32, 8>}, {transform_indices = @transform_1, window_bounds = array<i64: 1, 8>}, {transform_indices = @transform_2, window_bounds = array<i64: 1, 1>}]} {
    %c0 = arith.constant 0 : index
    %c0_0 = arith.constant 0 : index
    %0 = vector.load %arg1[%c0, %c0_0] : memref<32x8xf32, #tpu.memory_space<vmem>>, vector<32x8xf32>
    %c0_1 = arith.constant 0 : index
    %c0_2 = arith.constant 0 : index
    %1 = vector.load %arg2[%c0_1, %c0_2] : memref<1x8xi32, #tpu.memory_space<vmem>>, vector<1x8xi32>
    %2 = tpu.iota {dimensions = array<i32: 0>} : vector<32x8xi32>
    %3 = vector.broadcast %1 : vector<1x8xi32> to vector<32x8xi32>
    %4 = arith.cmpi eq, %2, %3 : vector<32x8xi32>
    %cst = arith.constant dense<0xFF800000> : vector<8xf32>
    %5 = vector.multi_reduction <maximumf>, %0, %cst [0] : vector<32x8xf32> to vector<8xf32>
    %6 = vector.shape_cast %5 : vector<8xf32> to vector<1x8xf32>
    %7 = vector.broadcast %6 : vector<1x8xf32> to vector<32x8xf32>
    %8 = arith.subf %0, %7 : vector<32x8xf32>
    %9 = math.exp %8 : vector<32x8xf32>
    %cst_3 = arith.constant dense<0.000000e+00> : vector<8xf32>
    %10 = vector.multi_reduction <add>, %9, %cst_3 [0] : vector<32x8xf32> to vector<8xf32>
    %11 = vector.shape_cast %10 : vector<8xf32> to vector<1x8xf32>
    %12 = math.log %11 : vector<1x8xf32>
    %13 = arith.addf %6, %12 : vector<1x8xf32>
    %cst_4 = arith.constant 0.000000e+00 : f32
    %14 = vector.broadcast %cst_4 : f32 to vector<32x8xf32>
    %15 = arith.select %4, %0, %14 : vector<32x8xi1>, vector<32x8xf32>
    %cst_5 = arith.constant dense<0.000000e+00> : vector<8xf32>
    %16 = vector.multi_reduction <add>, %15, %cst_5 [0] : vector<32x8xf32> to vector<8xf32>
    %17 = vector.shape_cast %16 : vector<8xf32> to vector<1x8xf32>
    %18 = arith.subf %13, %17 : vector<1x8xf32>
    %cst_6 = arith.constant 0.000000e+00 : f32
    %19 = vector.broadcast %cst_6 : f32 to vector<1x8xf32>
    %20 = arith.subf %19, %18 : vector<1x8xf32>
    %21 = math.exp %20 : vector<1x8xf32>
    %cst_7 = arith.constant 1.000000e+00 : f32
    %22 = vector.broadcast %cst_7 : f32 to vector<1x8xf32>
    %23 = arith.subf %22, %21 : vector<1x8xf32>
    %24 = arith.mulf %23, %23 : vector<1x8xf32>
    %25 = arith.mulf %24, %24 : vector<1x8xf32>
    %26 = arith.mulf %23, %25 : vector<1x8xf32>
    %27 = arith.mulf %26, %18 : vector<1x8xf32>
    %c8_i32 = arith.constant 8 : i32
    %28 = arith.muli %arg0, %c8_i32 : i32
    %c8_i32_8 = arith.constant 8 : i32
    %29 = arith.subi %c8_i32_8, %28 : i32
    %30 = tpu.iota {dimensions = array<i32: 1>} : vector<1x8xi32>
    %31 = vector.broadcast %29 : i32 to vector<1x8xi32>
    %32 = arith.cmpi slt, %30, %31 : vector<1x8xi32>
    %cst_9 = arith.constant 0.000000e+00 : f32
    %33 = vector.broadcast %cst_9 : f32 to vector<1x8xf32>
    %34 = arith.select %32, %27, %33 : vector<1x8xi1>, vector<1x8xf32>
    %35 = vector.shape_cast %34 : vector<1x8xf32> to vector<1x1x8xf32>
    %cst_10 = arith.constant dense<0.000000e+00> : vector<1xf32>
    %36 = vector.multi_reduction <add>, %35, %cst_10 [1, 2] : vector<1x1x8xf32> to vector<1xf32>
    %37 = vector.shape_cast %36 : vector<1xf32> to vector<1x1x1xf32>
    %38 = vector.extract %37[0, 0, 0] : f32 from vector<1x1x1xf32>
    %c0_11 = arith.constant 0 : index
    %c0_12 = arith.constant 0 : index
    %39 = memref.load %arg3[%c0_11, %c0_12] : memref<1x1xf32, #tpu.memory_space<smem>>
    memref.store %38, %arg3[%c0_11, %c0_12] : memref<1x1xf32, #tpu.memory_space<smem>>
    return
  }
  func.func @transform_0(%arg0: i32) -> (i32, i32) {
    %c0_i32 = arith.constant 0 : i32
    %c0_i32_0 = arith.constant 0 : i32
    return %c0_i32, %arg0 : i32, i32
  }
  func.func @transform_1(%arg0: i32) -> (i32, i32) {
    %c0_i32 = arith.constant 0 : i32
    %c0_i32_0 = arith.constant 0 : i32
    return %c0_i32, %arg0 : i32, i32
  }
  func.func @transform_2(%arg0: i32) -> (i32, i32) {
    %c0_i32 = arith.constant 0 : i32
    %c0_i32_0 = arith.constant 0 : i32
    return %arg0, %c0_i32 : i32, i32
  }
}

</mosaic_0001>

<llo_original>
// kernel: tpu_custom_call.1
$region0: #{tpu_custom_call.1}
  #allocation0 [shape = 'u32[]', space=smem, size = 0x4, offset = 0x4, fixed_abs, tag = 'smem constant byte address 0x4 - core index']
  #allocation1 [shape = 'u32[72,128]{1,0:T(1,128)}', space=vmem, size = 0x9000, scoped, tag = 'internal scratch']
  %s0 = inlined_call_operand.vmem [shape: f32[32,8], index: 0, kind: input, shape index: {}]
  %s1 = inlined_call_operand.vmem [shape: s32[1,8], index: 1, kind: input, shape index: {}]
  %s2 = inlined_call_operand.hbm [shape: f32[1,1], index: 2, kind: output, shape index: {}]
  %s3 = sld [smem:[#allocation0]]
  $region18: #{tpu_custom_call.1} parent=0
    _
  %s5 = ssub.s32 1, %s3
  %s6 = scalar_select 0, %s5, %s3
  $region1: #{tpu_custom_call.1} parent=0
    #allocation2 [shape = 'u8[512]{0}', space=smem, size = 0x200, scoped, tag = 'output window, operand 0, single buffered']
    #allocation3 [shape = 's32[1]{0}', space=sflag, size = 0x4, scoped, tag = 'scoped memory for tpu_custom_call.1']
    %7 = vsyncpa [#allocation3], 0
    // Predicated region
    $region2: #{tpu_custom_call.1} parent=1 // pred_check
      _
    $region3: #{tpu_custom_call.1} parent=1 // pred_check_branch
      %9 = sbr.rel (0) target = $region5
    $region4: #{tpu_custom_call.1} parent=1 // pred_region
      _
    $region5: #{tpu_custom_call.1} parent=1 // pred_fallthru
      _
    // Predicated region
    $region6: #{tpu_custom_call.1} parent=1 // pred_check
      _
    $region7: #{tpu_custom_call.1} parent=1 // pred_check_branch
      %11 = sbr.rel (0) target = $region9
    $region8: #{tpu_custom_call.1} parent=1 // pred_region
      _
    $region9: #{tpu_custom_call.1} parent=1 // pred_fallthru
      _
    %v12 = vld [vmem:[%s0] sm:$0xff]
    %v13 = vld [vmem:[%s0 + $0x8] sm:$0xff]
    %v14 = vld [vmem:[%s0 + $0x10] sm:$0xff]
    %v15 = vld [vmem:[%s0 + $0x18] sm:$0xff]
    %v16 = vld [vmem:[%s1] sm:$0x1]
    %v17 = vlaneseq
    %v18 = vshrl.u32 %v17, 7
    %v19 = vadd.s32 %v18, 8
    %v20 = vadd.s32 %v18, 16
    %v21 = vadd.s32 %v18, 24
    %v22 = vperm.slane %v16, 0
    %vm23 = vcmp.eq.s32.totalorder %v18, %v22
    %vm24 = vcmp.eq.s32.totalorder %v19, %v22
    %vm25 = vcmp.eq.s32.totalorder %v20, %v22
    %vm26 = vcmp.eq.s32.totalorder %v21, %v22
    %vm27 = vcmask 64512
    %v28 = vsel %vm27, %v12, -inf
    %v29 = vsel %vm27, %v13, -inf
    %v30 = vsel %vm27, %v14, -inf
    %v31 = vsel %vm27, %v15, -inf
    %v32 = vmax.f32 %v28, %v29
    %v33 = vmax.f32 %v30, %v31
    %v34 = vmax.f32 %v32, %v33
    %v35 = vrot.slane %v34, 4
    %v36 = vmax.f32 %v34, %v35
    %v37 = vrot.slane %v36, 2
    %v38 = vmax.f32 %v36, %v37
    %v39 = vrot.slane %v38, 1
    %v40 = vmax.f32 %v38, %v39
    %v41 = vsub.f32 %v12, %v40
    %v42 = vsub.f32 %v13, %v40
    %v43 = vsub.f32 %v14, %v40
    %v44 = vsub.f32 %v15, %v40
    %v45 = vmul.f32 %v41, 1.442695
    %v46 = vpow.pop %v45
    %v47 = vmul.f32 %v42, 1.442695
    %v48 = vpow.pop %v47
    %v49 = vmul.f32 %v43, 1.442695
    %v50 = vpow.pop %v49
    %v51 = vmul.f32 %v44, 1.442695
    %v52 = vpow.pop %v51
    %v53 = vsel %vm27, %v46, 0.0
    %v54 = vsel %vm27, %v48, 0.0
    %v55 = vadd.f32 %v53, %v54
    %v56 = vsel %vm27, %v50, 0.0
    %v57 = vadd.f32 %v55, %v56
    %v58 = vsel %vm27, %v52, 0.0
    %v59 = vadd.f32 %v57, %v58
    %v60 = vrot.slane %v59, 4
    %v61 = vadd.f32 %v59, %v60
    %v62 = vrot.slane %v61, 2
    %v63 = vadd.f32 %v61, %v62
    %v64 = vrot.slane %v63, 1
    %v65 = vadd.f32 %v63, %v64
    %v66 = vlog2.pop %v65
    %v67 = vmul.f32 %v66, 0.6931472
    %v68 = vadd.f32 %v40, %v67
    %v69 = vsel %vm23, %v12, 0.0
    %v70 = vsel %vm24, %v13, 0.0
    %v71 = vsel %vm25, %v14, 0.0
    %v72 = vsel %vm26, %v15, 0.0
    %v73 = vsel %vm27, %v69, 0.0
    %v74 = vsel %vm27, %v70, 0.0
    %v75 = vadd.f32 %v73, %v74
    %v76 = vsel %vm27, %v71, 0.0
    %v77 = vadd.f32 %v75, %v76
    %v78 = vsel %vm27, %v72, 0.0
    %v79 = vadd.f32 %v77, %v78
    %v80 = vrot.slane %v79, 4
    %v81 = vadd.f32 %v79, %v80
    %v82 = vrot.slane %v81, 2
    %v83 = vadd.f32 %v81, %v82
    %v84 = vrot.slane %v83, 1
    %v85 = vadd.f32 %v83, %v84
    %v86 = vsub.f32 %v68, %v85
    %v87 = vsub.f32 0.0, %v86
    %v88 = vmul.f32 %v87, 1.442695
    %v89 = vpow.pop %v88
    %v90 = vsub.f32 1.0, %v89
    %v91 = vmul.f32 %v90, %v90
    %v92 = vmul.f32 %v91, %v91
    %v93 = vmul.f32 %v90, %v92
    %v94 = vmul.f32 %v93, %v86
    %s95 = smul.u32 0, 8
    %s96 = ssub.s32 8, %s95
    %v97 = vlaneseq
    %v98 = vand.u32 %v97, 127
    %v99 = vstv %s96
    %vm100 = vcmp.lt.s32.totalorder %v98, %v99
    %v101 = vsel %vm100, %v94, 0.0
    %vm102 = vcmask 57344
    %v103 = vsel %vm102, %v101, 0.0
    %104 = vadd.xlane.f32.xlu0 %v103
    %v105 = vpop.xlane.xlu0 %104
    %v106 = vrot.slane %v105, 4
    %v107 = vadd.f32 %v105, %v106
    %v108 = vrot.slane %v107, 2
    %v109 = vadd.f32 %v107, %v108
    %v110 = vrot.slane %v109, 1
    %v111 = vadd.f32 %v109, %v110
    %s112 = vtos %v111
    %s113 = scalar_lea.smem [#allocation2], 0
    %114 = sst [smem:[%s113]] %s112
    // Predicated region
    $region10: #{tpu_custom_call.1} parent=1 // pred_check
      _
    $region11: #{tpu_custom_call.1} parent=1 // pred_check_branch
      %116 = sbr.rel (0) target = $region13
    $region12: #{tpu_custom_call.1} parent=1 // pred_region
      %118 = vsyncadd [#allocation3], 0
      %s120 = sshll.u32 %s2, 4
      %s121 = int_to_ptr.hbm [resolvable:$true] %s120
      %123 = dma.smem_to_hbm [#allocation2], 16, %s121, [#allocation3]
    $region13: #{tpu_custom_call.1} parent=1 // pred_fallthru
      _
    // Predicated region
    $region14: #{tpu_custom_call.1} parent=1 // pred_check
      _
    $region15: #{tpu_custom_call.1} parent=1 // pred_check_branch
      %125 = sbr.rel (0) target = $region17
    $region16: #{tpu_custom_call.1} parent=1 // pred_region
      %127 = dma.done [#allocation3], 16
    $region17: #{tpu_custom_call.1} parent=1 // pred_fallthru
      _
    %128 = sfence
    %129 = vsyncpa [#allocation3], 1

</llo_original>
